<compile_context>
chip_gen: v6e
topology: v6e:2x2x1
jax: 0.10.0
libtpu: 0.0.40
codegen_flags: <defaults>
</compile_context>

<pallas_src>
import jax
import jax.numpy as jnp
from jax import lax
from jax.experimental import pallas as pl
from jax.experimental.pallas import tpu as pltpu

# Small, module-consistent sizes (module uses nEmb=384, blockSiz=256; smaller
# here, semantics identical; scale is headSiz**-0.5 as in the reference).
B = 2        # batch
T = 8        # sequence length (<= blockSiz)
C = 128      # embedding dim (nEmb)
H = 64       # head size (headSiz)
SLOT = 128   # lane-aligned slot width for each of k/q/v in the fused weight


def prepare_head_params(wk, wq, wv, seq_len):
    """One-time parameter preparation (outside the per-forward hot path).

    wk/wq/wv: (C, H) f32, already stored as W_pytorch.T.
    Returns:
      w_fused: (C, 3*SLOT) bf16 fused QKV weight; softmax scale baked into the
               q slot; each of k/q/v occupies a 128-lane-aligned slot.
      mask:    (seq_len, seq_len) f32 additive causal mask (0 / -inf).
    """
    c, h = wk.shape
    scale = h ** -0.5
    w_fused = jnp.zeros((c, 3 * SLOT), dtype=jnp.float32)
    w_fused = w_fused.at[:, 0 * SLOT:0 * SLOT + h].set(wk)
    w_fused = w_fused.at[:, 1 * SLOT:1 * SLOT + h].set(wq * scale)  # bake scale
    w_fused = w_fused.at[:, 2 * SLOT:2 * SLOT + h].set(wv)
    w_fused = w_fused.astype(jnp.bfloat16)

    row = jnp.arange(seq_len)[:, None]
    col = jnp.arange(seq_len)[None, :]
    mask = jnp.where(col <= row, 0.0, -jnp.inf).astype(jnp.float32)
    return w_fused, mask


def head_forward(x, w_fused, mask):
    """x: (B, T, C) f32; w_fused: (C, 3*SLOT) bf16; mask: (T, T) f32."""
    Bx, Tx, Cx = x.shape
    Hx = H

    def kernel(x_ref, w_ref, m_ref, o_ref):
        # x_ref: (T, C) f32 (batch dim squeezed by BlockSpec)
        # w_ref: (C, 3*SLOT) bf16 ; m_ref: (T, T) f32 ; o_ref: (T, H) f32
        x_bf = x_ref[...].astype(jnp.bfloat16)            # in-kernel cast (VPU)

        # Single fused projection: one MXU push, lane-aligned 128-wide slots.
        qkv = jnp.dot(x_bf, w_ref[...],
                      preferred_element_type=jnp.float32)  # (T, 3*SLOT) f32
        k = qkv[:, 0 * SLOT:0 * SLOT + Hx]                 # (T, H) slices all
        q = qkv[:, 1 * SLOT:1 * SLOT + Hx]                 # start at a vreg
        v = qkv[:, 2 * SLOT:2 * SLOT + Hx]                 # lane boundary

        # Scores: q @ k^T (contraction on last dims, no in-kernel transpose).
        # Scale already baked into the q projection weights.
        s = lax.dot_general(q.astype(jnp.bfloat16), k.astype(jnp.bfloat16),
                            (((1,), (1,)), ((), ())),
                            preferred_element_type=jnp.float32)  # (T, T)

        # Causal mask: single additive 0/-inf constant (precomputed).
        s = s + m_ref[...]

        # Numerically stable softmax, f32 on the VPU/EUP path (v5e-safe).
        m = jnp.max(s, axis=-1, keepdims=True)
        e = jnp.exp(s - m)
        denom = jnp.sum(e, axis=-1, keepdims=True)
        p = e * pl.reciprocal(denom, approx=True)          # EUP slot

        # TODO(synk): training-mode dropout (p=0.2) would use pltpu.prng_seed +
        # pltpu.prng_random_bits; eval-mode (identity) semantics kept here.

        out = jnp.dot(p.astype(jnp.bfloat16), v.astype(jnp.bfloat16),
                      preferred_element_type=jnp.float32)  # (T, H)
        o_ref[...] = out
        # NOTE: last dim 64 < 128 -> masked stores; at real sizes fuse multiple
        # heads so the output slab is >=128 lanes (unmasked vst).

    # Advisory cost hint for the XLA scheduler.
    flops = (2 * Bx * Tx * Cx * (3 * SLOT)      # fused projection (padded)
             + 2 * Bx * Tx * Tx * Hx            # q @ k^T
             + 2 * Bx * Tx * Tx * Hx)           # p @ v
    bytes_accessed = (x.size * 4 + w_fused.size * 2
                      + mask.size * 4 + Bx * Tx * Hx * 4)

    return pl.pallas_call(
        kernel,
        out_shape=jax.ShapeDtypeStruct((Bx, Tx, Hx), jnp.float32),
        grid=(Bx,),
        in_specs=[
            pl.BlockSpec((None, Tx, Cx), lambda b: (b, 0, 0)),   # x (per-batch)
            pl.BlockSpec((Cx, 3 * SLOT), lambda b: (0, 0)),       # weights (DMA once)
            pl.BlockSpec((Tx, Tx), lambda b: (0, 0)),             # mask (DMA once)
        ],
        out_specs=pl.BlockSpec((None, Tx, Hx), lambda b: (b, 0, 0)),
        compiler_params=pltpu.CompilerParams(
            dimension_semantics=("parallel",)),   # 2 TCs on v7x; neutral v5e/v6e
        cost_estimate=pl.CostEstimate(
            flops=flops,
            transcendentals=Bx * Tx * Tx,
            bytes_accessed=bytes_accessed),
    )(x, w_fused, mask)


def reference_forward(x, wk, wq, wv):
    """Pure-JAX f32 reference mirroring the PyTorch module (eval mode)."""
    k = x @ wk
    q = x @ wq
    v = x @ wv
    w = (q @ jnp.swapaxes(k, -2, -1)) * (k.shape[-1] ** -0.5)
    mask = jnp.tril(jnp.ones((x.shape[1], x.shape[1]), dtype=bool))
    w = jnp.where(mask, w, -jnp.inf)
    w = jax.nn.softmax(w, axis=-1)
    return w @ v


if __name__ == "__main__":
    key = jax.random.PRNGKey(0)
    kx, kk, kq, kv = jax.random.split(key, 4)

    x = jax.random.normal(kx, (B, T, C), dtype=jnp.float32)
    # Deterministic "Linear" weights, stored as (C, H) == W_pytorch.T
    wk = jax.random.normal(kk, (C, H), dtype=jnp.float32) * (C ** -0.5)
    wq = jax.random.normal(kq, (C, H), dtype=jnp.float32) * (C ** -0.5)
    wv = jax.random.normal(kv, (C, H), dtype=jnp.float32) * (C ** -0.5)

    # One-time prep (fused/scaled/bf16 weights + additive causal mask); this is
    # the stored-parameter form, NOT part of the per-forward hot path.
    w_fused, mask = prepare_head_params(wk, wq, wv, T)
    w_fused = jax.block_until_ready(w_fused)
    mask = jax.block_until_ready(mask)

    out = head_forward(x, w_fused, mask)
    out = jax.block_until_ready(out)

    ref = reference_forward(x, wk, wq, wv)
    assert out.shape == (B, T, H), out.shape
    # bf16 MXU operands (f32 accumulation) + approx reciprocal -> loose tol.
    assert jnp.allclose(out, ref, atol=2e-2, rtol=2e-2), "mismatch vs reference"

    print("KERNEL_OK")
</pallas_src>

<mosaic_0001>
module attributes {stable_mosaic.version = 11 : i64} {
  func.func @kernel(%arg0: i32, %arg1: memref<1x8x128xf32, #tpu.memory_space<vmem>>, %arg2: memref<128x384xbf16, #tpu.memory_space<vmem>>, %arg3: memref<8x8xf32, #tpu.memory_space<vmem>>, %arg4: memref<1x8x64xf32, #tpu.memory_space<vmem>>) attributes {dimension_semantics = [#tpu.dimension_semantics<parallel>], iteration_bounds = array<i64: 2>, scalar_prefetch = 0 : i64, scratch_operands = 0 : i64, tpu.core_type = #tpu.core_type<tc>, window_params = [{transform_indices = @transform_0, window_bounds = array<i64: 1, 8, 128>}, {pipeline_mode = #tpu.pipeline_mode<synchronous>, transform_indices = @transform_1, window_bounds = array<i64: 128, 384>}, {pipeline_mode = #tpu.pipeline_mode<synchronous>, transform_indices = @transform_2, window_bounds = array<i64: 8, 8>}, {transform_indices = @transform_3, window_bounds = array<i64: 1, 8, 64>}]} {
    %c0 = arith.constant 0 : index
    %c0_0 = arith.constant 0 : index
    %c0_1 = arith.constant 0 : index
    %0 = vector.load %arg1[%c0, %c0_0, %c0_1] : memref<1x8x128xf32, #tpu.memory_space<vmem>>, vector<1x8x128xf32>
    %1 = vector.shape_cast %0 : vector<1x8x128xf32> to vector<8x128xf32>
    %2 = arith.truncf %1 : vector<8x128xf32> to vector<8x128xbf16>
    %c0_2 = arith.constant 0 : index
    %c0_3 = arith.constant 0 : index
    %3 = vector.load %arg2[%c0_2, %c0_3] : memref<128x384xbf16, #tpu.memory_space<vmem>>, vector<128x384xbf16>
    %cst = arith.constant dense<0.000000e+00> : vector<8x384xf32>
    %4 = tpu.matmul %2, %3, %cst {dimension_numbers = #tpu.dot_dimension_numbers<[1], [0], [0], [1], [0, 0, 1, 1], [], []>} : vector<8x128xbf16>, vector<128x384xbf16>, vector<8x384xf32> -> vector<8x384xf32>
    %5 = vector.extract_strided_slice %4 {offsets = [0, 0], sizes = [8, 64], strides = [1, 1]} : vector<8x384xf32> to vector<8x64xf32>
    %6 = vector.extract_strided_slice %4 {offsets = [0, 128], sizes = [8, 64], strides = [1, 1]} : vector<8x384xf32> to vector<8x64xf32>
    %7 = vector.extract_strided_slice %4 {offsets = [0, 256], sizes = [8, 64], strides = [1, 1]} : vector<8x384xf32> to vector<8x64xf32>
    %8 = arith.truncf %6 : vector<8x64xf32> to vector<8x64xbf16>
    %9 = arith.truncf %5 : vector<8x64xf32> to vector<8x64xbf16>
    %cst_4 = arith.constant dense<0.000000e+00> : vector<8x8xf32>
    %10 = tpu.matmul %8, %9, %cst_4 {dimension_numbers = #tpu.dot_dimension_numbers<[1], [1], [0], [0], [0, 0, 1, 0], [], []>} : vector<8x64xbf16>, vector<8x64xbf16>, vector<8x8xf32> -> vector<8x8xf32>
    %c0_5 = arith.constant 0 : index
    %c0_6 = arith.constant 0 : index
    %11 = vector.load %arg3[%c0_5, %c0_6] : memref<8x8xf32, #tpu.memory_space<vmem>>, vector<8x8xf32>
    %12 = arith.addf %10, %11 : vector<8x8xf32>
    %cst_7 = arith.constant dense<0xFF800000> : vector<8xf32>
    %13 = vector.multi_reduction <maximumf>, %12, %cst_7 [1] : vector<8x8xf32> to vector<8xf32>
    %14 = vector.shape_cast %13 : vector<8xf32> to vector<8x1xf32>
    %15 = vector.broadcast %14 : vector<8x1xf32> to vector<8x8xf32>
    %16 = arith.subf %12, %15 : vector<8x8xf32>
    %17 = math.exp %16 : vector<8x8xf32>
    %cst_8 = arith.constant dense<0.000000e+00> : vector<8xf32>
    %18 = vector.multi_reduction <add>, %17, %cst_8 [1] : vector<8x8xf32> to vector<8xf32>
    %19 = vector.shape_cast %18 : vector<8xf32> to vector<8x1xf32>
    %20 = tpu.reciprocal %19 {approx = true} : vector<8x1xf32> -> vector<8x1xf32>
    %21 = vector.broadcast %20 : vector<8x1xf32> to vector<8x8xf32>
    %22 = arith.mulf %17, %21 : vector<8x8xf32>
    %23 = arith.truncf %22 : vector<8x8xf32> to vector<8x8xbf16>
    %24 = arith.truncf %7 : vector<8x64xf32> to vector<8x64xbf16>
    %cst_9 = arith.constant dense<0.000000e+00> : vector<8x64xf32>
    %25 = tpu.matmul %23, %24, %cst_9 {dimension_numbers = #tpu.dot_dimension_numbers<[1], [0], [0], [1], [0, 0, 1, 1], [], []>} : vector<8x8xbf16>, vector<8x64xbf16>, vector<8x64xf32> -> vector<8x64xf32>
    %c0_10 = arith.constant 0 : index
    %c0_11 = arith.constant 0 : index
    %c0_12 = arith.constant 0 : index
    %26 = vector.load %arg4[%c0_10, %c0_11, %c0_12] : memref<1x8x64xf32, #tpu.memory_space<vmem>>, vector<1x8x64xf32>
    %27 = vector.shape_cast %26 : vector<1x8x64xf32> to vector<8x64xf32>
    %28 = vector.shape_cast %25 : vector<8x64xf32> to vector<1x8x64xf32>
    tpu.vector_store %arg4[%c0_10, %c0_11, %c0_12], %28 {strides = array<i32>} : memref<1x8x64xf32, #tpu.memory_space<vmem>>, vector<1x8x64xf32>,
    return
  }
  func.func @transform_0(%arg0: i32) -> (i32, i32, i32) {
    %c0_i32 = arith.constant 0 : i32
    %c0_i32_0 = arith.constant 0 : i32
    %c0_i32_1 = arith.constant 0 : i32
    return %arg0, %c0_i32, %c0_i32_0 : i32, i32, i32
  }
  func.func @transform_1(%arg0: i32) -> (i32, i32) {
    %c0_i32 = arith.constant 0 : i32
    %c0_i32_0 = arith.constant 0 : i32
    %c0_i32_1 = arith.constant 0 : i32
    return %c0_i32, %c0_i32_0 : i32, i32
  }
  func.func @transform_2(%arg0: i32) -> (i32, i32) {
    %c0_i32 = arith.constant 0 : i32
    %c0_i32_0 = arith.constant 0 : i32
    %c0_i32_1 = arith.constant 0 : i32
    return %c0_i32, %c0_i32_0 : i32, i32
  }
  func.func @transform_3(%arg0: i32) -> (i32, i32, i32) {
    %c0_i32 = arith.constant 0 : i32
    %c0_i32_0 = arith.constant 0 : i32
    %c0_i32_1 = arith.constant 0 : i32
    return %arg0, %c0_i32, %c0_i32_0 : i32, i32, i32
  }
}

</mosaic_0001>

<llo_original>
// kernel: tpu_custom_call.1
$region0: #{tpu_custom_call.1}
  #allocation0 [shape = 'u32[]', space=smem, size = 0x4, offset = 0x4, fixed_abs, tag = 'smem constant byte address 0x4 - core index']
  #allocation1 [shape = 'u32[144,128]{1,0:T(1,128)}', space=vmem, size = 0x12000, scoped, tag = 'internal scratch']
  %s0 = inlined_call_operand.hbm [shape: f32[2,8,128], index: 0, kind: input, shape index: {}]
  %s1 = inlined_call_operand.hbm [shape: bf16[128,384], index: 1, kind: input, shape index: {}]
  %s2 = inlined_call_operand.hbm [shape: f32[8,8], index: 2, kind: input, shape index: {}]
  %s3 = inlined_call_operand.hbm [shape: f32[2,8,64], index: 3, kind: output, shape index: {}]
  %s4 = sld [smem:[#allocation0]]
  $region57: #{tpu_custom_call.1} parent=0
    _
  %s6 = ssub.s32 1, %s4
  %s7 = scalar_select 0, %s6, %s4
  $region1: #{tpu_custom_call.1} parent=0
    #allocation2 [shape = 'u8[8192]{0}', space=vmem, size = 0x2000, scoped, tag = 'input window, operand 0']
    #allocation3 [shape = 's32[2]{0}', space=sflag, size = 0x8, scoped, tag = 'scoped memory for tpu_custom_call.1']
    #allocation4 [shape = 's32[2]{0}', space=sflag, size = 0x8, scoped, tag = 'scoped memory for tpu_custom_call.1']
    #allocation5 [shape = 'u8[98304]{0}', space=vmem, size = 0x18000, scoped, tag = 'input window, operand 1, single buffered']
    #allocation6 [shape = 's32[1]{0}', space=sflag, size = 0x4, scoped, tag = 'scoped memory for tpu_custom_call.1']
    #allocation7 [shape = 'u8[4096]{0}', space=vmem, size = 0x1000, scoped, tag = 'input window, operand 2, single buffered']
    #allocation8 [shape = 'u8[8192]{0}', space=vmem, size = 0x2000, scoped, tag = 'output window, operand 0']
    %8 = vsyncpa [#allocation3], 0
    %s9 = scalar_lea.sflag [#allocation3], 1
    %10 = vsyncpa %s9, 0
    %11 = vsyncpa [#allocation6], 0
    %12 = vsyncpa [#allocation4], 0
    %s13 = scalar_lea.sflag [#allocation4], 1
    %14 = vsyncpa %s13, 0
    loop: start=0, step=1, limit=4
    $region2: #{tpu_custom_call.1} parent=1 // loop_pre_header
      _
    $region3: #{tpu_custom_call.1} parent=1 // loop_header
      %s16 = sphi 0, %s20
      %p17 = scmp.ge.s32.totalorder %s16, 4
      %s26 = sphi 0, %s28
      %s29 = sphi 0, %s26
      %s30 = sphi 0, %s29
      %s46 = sphi 0, %s30
      %s50 = sphi 0, %s50
      %s52 = sphi 0, %s50
      %s53 = sphi 0, %s52
      %s67 = sphi 0, %s53
      %s71 = sphi 0, %s71
      %s73 = sphi 0, %s71
      %s74 = sphi 0, %s73
      %s88 = sphi 0, %s74
      %s94 = sphi 0, %s96
      %s97 = sphi 0, %s94
      %s98 = sphi 0, %s97
      %s114 = sphi 0, %s98
    $region4: #{tpu_custom_call.1} parent=1 // loop_header_branch
      %19 = sbr.rel (%p17) target = $region8
    $region5: #{tpu_custom_call.1} parent=1 // loop_body
      %s21 = ssub.s32 %s16, 1
      %s22 = ssub.s32 %s16, 2
      %s23 = sadd.s32 %s16, 1
      %s24 = ssub.s32 %s16, %s23
      %p25 = scmp.eq.s32.totalorder %s24, 0
      %s27 = sadd.s32 %s26, 1
      %s28 = scalar_select %p25, %s26, %s27
      %p31 = pneg %p25
      %p32 = scmp.eq.s32.totalorder %s16, 1
      %p33 = por %p31, %p32
      %p34 = scmp.ne.s32.totalorder %s26, %s29
      %p35 = scmp.eq.s32.totalorder %s16, 0
      %p36 = por %p34, %p35
      %p37 = scmp.ne.s32.totalorder %s26, %s29
      %p38 = scmp.eq.s32.totalorder %s21, 1
      %p39 = por %p37, %p38
      %p40 = scmp.ne.s32.totalorder %s29, %s30
      %p41 = scmp.eq.s32.totalorder %s21, 0
      %p42 = por %p40, %p41
      %p43 = scmp.ne.s32.totalorder %s29, %s30
      %p44 = scmp.eq.s32.totalorder %s22, 1
      %p45 = por %p43, %p44
      %p47 = scmp.ne.s32.totalorder %s30, %s46
      %p48 = scmp.eq.s32.totalorder %s22, 0
      %p49 = por %p47, %p48
      %s51 = sadd.s32 %s50, 1
      %p54 = scmp.eq.s32.totalorder %s16, 1
      %p55 = scmp.ne.s32.totalorder %s50, %s52
      %p56 = scmp.eq.s32.totalorder %s16, 0
      %p57 = por %p55, %p56
      %p58 = scmp.ne.s32.totalorder %s50, %s52
      %p59 = scmp.eq.s32.totalorder %s21, 1
      %p60 = por %p58, %p59
      %p61 = scmp.ne.s32.totalorder %s52, %s53
      %p62 = scmp.eq.s32.totalorder %s21, 0
      %p63 = por %p61, %p62
      %p64 = scmp.ne.s32.totalorder %s52, %s53
      %p65 = scmp.eq.s32.totalorder %s22, 1
      %p66 = por %p64, %p65
      %p68 = scmp.ne.s32.totalorder %s53, %s67
      %p69 = scmp.eq.s32.totalorder %s22, 0
      %p70 = por %p68, %p69
      %s72 = sadd.s32 %s71, 1
      %p75 = scmp.eq.s32.totalorder %s16, 1
      %p76 = scmp.ne.s32.totalorder %s71, %s73
      %p77 = scmp.eq.s32.totalorder %s16, 0
      %p78 = por %p76, %p77
      %p79 = scmp.ne.s32.totalorder %s71, %s73
      %p80 = scmp.eq.s32.totalorder %s21, 1
      %p81 = por %p79, %p80
      %p82 = scmp.ne.s32.totalorder %s73, %s74
      %p83 = scmp.eq.s32.totalorder %s21, 0
      %p84 = por %p82, %p83
      %p85 = scmp.ne.s32.totalorder %s73, %s74
      %p86 = scmp.eq.s32.totalorder %s22, 1
      %p87 = por %p85, %p86
      %p89 = scmp.ne.s32.totalorder %s74, %s88
      %p90 = scmp.eq.s32.totalorder %s22, 0
      %p91 = por %p89, %p90
      %s92 = ssub.s32 %s16, %s23
      %p93 = scmp.eq.s32.totalorder %s92, 0
      %s95 = sadd.s32 %s94, 1
      %s96 = scalar_select %p93, %s94, %s95
      %p99 = pneg %p93
      %p100 = scmp.eq.s32.totalorder %s16, 1
      %p101 = por %p99, %p100
      %p102 = scmp.ne.s32.totalorder %s94, %s97
      %p103 = scmp.eq.s32.totalorder %s16, 0
      %p104 = por %p102, %p103
      %p105 = scmp.ne.s32.totalorder %s94, %s97
      %p106 = scmp.eq.s32.totalorder %s21, 1
      %p107 = por %p105, %p106
      %p108 = scmp.ne.s32.totalorder %s97, %s98
      %p109 = scmp.eq.s32.totalorder %s21, 0
      %p110 = por %p108, %p109
      %p111 = scmp.ne.s32.totalorder %s97, %s98
      %p112 = scmp.eq.s32.totalorder %s22, 1
      %p113 = por %p111, %p112
      %p115 = scmp.ne.s32.totalorder %s98, %s114
      %p116 = scmp.eq.s32.totalorder %s22, 0
      %p117 = por %p115, %p116
      %p118 = scmp.le.s32.totalorder 1, %s16
      %p119 = scmp.lt.s32.totalorder %s16, 3
      %p120 = pnand %p118, %p119
      %p121 = pneg %p120
      // Predicated region
      $region9: #{tpu_custom_call.1} parent=5 // pred_check
        _
      $region10: #{tpu_custom_call.1} parent=5 // pred_check_branch
        %123 = sbr.rel (%p120) target = $region12
      $region11: #{tpu_custom_call.1} parent=5 // pred_region
        %s124 = ssub.s32 %s16, 1
        // Predicated region
        $region13: #{tpu_custom_call.1} parent=11 // pred_check
          %p125 = pneg %p63
        $region14: #{tpu_custom_call.1} parent=11 // pred_check_branch
          %127 = sbr.rel (%p125) target = $region16
        $region15: #{tpu_custom_call.1} parent=11 // pred_region
          %s129 = ssub.s32 3072, 3072
          %130 = vsyncadd [#allocation6], %s129
          %s131 = sshll.u32 [#allocation5], 4
          %s132 = int_to_ptr.vmem [resolvable:$true] %s131
          %137 = dma.hbm_to_vmem [thread:$0]  %s1, 3072, %s132, [#allocation6], 192, 192, 12
        $region16: #{tpu_custom_call.1} parent=11 // pred_fallthru
          _
        // Predicated region
        $region17: #{tpu_custom_call.1} parent=11 // pred_check
          %p138 = pneg %p84
        $region18: #{tpu_custom_call.1} parent=11 // pred_check_branch
          %140 = sbr.rel (%p138) target = $region20
        $region19: #{tpu_custom_call.1} parent=11 // pred_region
          %s142 = ssub.s32 128, 128
          %143 = vsyncadd [#allocation6], %s142
          %s145 = sshll.u32 [#allocation7], 4
          %s146 = int_to_ptr.vmem [resolvable:$true] %s145
          %148 = dma.hbm_to_vmem [thread:$0]  %s2, 128, %s146, [#allocation6]
        $region20: #{tpu_custom_call.1} parent=11 // pred_fallthru
          _
      $region12: #{tpu_custom_call.1} parent=5 // pred_fallthru
        _
      %p149 = scmp.lt.s32.totalorder %s16, 2
      // Predicated region
      $region21: #{tpu_custom_call.1} parent=5 // pred_check
        %p150 = pneg %p149
      $region22: #{tpu_custom_call.1} parent=5 // pred_check_branch
        %152 = sbr.rel (%p150) target = $region24
      $region23: #{tpu_custom_call.1} parent=5 // pred_region
        // Predicated region
        $region25: #{tpu_custom_call.1} parent=23 // pred_check
          %p153 = pneg %p36
        $region26: #{tpu_custom_call.1} parent=23 // pred_check_branch
          %155 = sbr.rel (%p153) target = $region28
        $region27: #{tpu_custom_call.1} parent=23 // pred_region
          %s156 = sand.u32 %s26, 1
          %s157 = scalar_lea.sflag [#allocation3], %s156
          %s158 = sand.u32 %s26, 1
          %s159 = smul.addr %s158, 8
          %s160 = scalar_lea.vmem [#allocation2], %s159
          %s162 = ssub.s32 128, 128
          %163 = vsyncadd %s157, %s162
          %s164 = smul.addr %s16, 128
          %s165 = scalar_lea.hbm %s0, %s164
          %s167 = sshll.u32 %s160, 4
          %s168 = int_to_ptr.vmem [resolvable:$true] %s167
          %170 = dma.hbm_to_vmem [thread:$0]  %s165, 128, %s168, %s157
        $region28: #{tpu_custom_call.1} parent=23 // pred_fallthru
          _
      $region24: #{tpu_custom_call.1} parent=5 // pred_fallthru
        _
      %p171 = scmp.le.s32.totalorder 1, %s16
      %p172 = scmp.lt.s32.totalorder %s16, 3
      %p173 = pnand %p171, %p172
      %p174 = pneg %p173
      // Predicated region
      $region29: #{tpu_custom_call.1} parent=5 // pred_check
        _
      $region30: #{tpu_custom_call.1} parent=5 // pred_check_branch
        %176 = sbr.rel (%p173) target = $region32
      $region31: #{tpu_custom_call.1} parent=5 // pred_region
        %s177 = ssub.s32 %s16, 1
        %s178 = sand.u32 %s29, 1
        %s179 = scalar_lea.sflag [#allocation3], %s178
        %s180 = sand.u32 %s29, 1
        %s181 = smul.addr %s180, 8
        %s182 = scalar_lea.vmem [#allocation2], %s181
        // Predicated region
        $region33: #{tpu_custom_call.1} parent=31 // pred_check
          %p183 = pneg %p42
        $region34: #{tpu_custom_call.1} parent=31 // pred_check_branch
          %185 = sbr.rel (%p183) target = $region36
        $region35: #{tpu_custom_call.1} parent=31 // pred_region
          %186 = dma.done %s179, 128
        $region36: #{tpu_custom_call.1} parent=31 // pred_fallthru
          _
        // Predicated region
        $region37: #{tpu_custom_call.1} parent=31 // pred_check
          %p187 = pneg %p63
        $region38: #{tpu_custom_call.1} parent=31 // pred_check_branch
          %189 = sbr.rel (%p187) target = $region40
        $region39: #{tpu_custom_call.1} parent=31 // pred_region
          %190 = dma.done [#allocation6], 3072
        $region40: #{tpu_custom_call.1} parent=31 // pred_fallthru
          _
        // Predicated region
        $region41: #{tpu_custom_call.1} parent=31 // pred_check
          %p191 = pneg %p84
        $region42: #{tpu_custom_call.1} parent=31 // pred_check_branch
          %193 = sbr.rel (%p191) target = $region44
        $region43: #{tpu_custom_call.1} parent=31 // pred_region
          %194 = dma.done [#allocation6], 128
        $region44: #{tpu_custom_call.1} parent=31 // pred_fallthru
          _
        %s195 = sand.u32 %s29, 1
        %s196 = scalar_lea.sflag [#allocation3], %s195
        %s197 = sand.u32 %s29, 1
        %s198 = smul.addr %s197, 8
        %s199 = scalar_lea.vmem [#allocation2], %s198
        %p200 = pneg %p42
        %p201 = pneg %p39
        %p202 = pneg %p63
        %p203 = pneg %p60
        %p204 = pneg %p84
        %p205 = pneg %p81
        %p206 = pneg %p110
        %p207 = pneg %p107
        %s208 = sand.u32 %s97, 1
        %s209 = scalar_lea.sflag [#allocation4], %s208
        %s210 = sand.u32 %s97, 1
        %s211 = smul.addr %s210, 8
        %s212 = scalar_lea.vmem [#allocation8], %s211
        %v214 = vld [vmem:[%s182] sm:$0xff]
        %v215 = vpack.c.bf16 %v214, %v214
        %v216 = vld [vmem:[#allocation5] sm:$0xff]
        %v217 = vld [vmem:[#allocation5 + $0x8] sm:$0xf]
        %v218 = vld [vmem:[#allocation5 + $0xc] sm:$0xff]
        %v219 = vld [vmem:[#allocation5 + $0x14] sm:$0xf]
        %v220 = vld [vmem:[#allocation5 + $0x18] sm:$0xff]
        %v221 = vld [vmem:[#allocation5 + $0x20] sm:$0xf]
        %v222 = vld [vmem:[#allocation5 + $0x24] sm:$0xff]
        %v223 = vld [vmem:[#allocation5 + $0x2c] sm:$0xf]
        %v224 = vld [vmem:[#allocation5 + $0x30] sm:$0xff]
        %v225 = vld [vmem:[#allocation5 + $0x38] sm:$0xf]
        %v226 = vld [vmem:[#allocation5 + $0x3c] sm:$0xff]
        %v227 = vld [vmem:[#allocation5 + $0x44] sm:$0xf]
        %v228 = vld [vmem:[#allocation5 + $0x48] sm:$0xff]
        %v229 = vld [vmem:[#allocation5 + $0x50] sm:$0xf]
        %v230 = vld [vmem:[#allocation5 + $0x54] sm:$0xff]
        %v231 = vld [vmem:[#allocation5 + $0x5c] sm:$0xf]
        %v232 = vld [vmem:[#allocation5 + $0x60] sm:$0xff]
        %v233 = vld [vmem:[#allocation5 + $0x68] sm:$0xf]
        %v234 = vld [vmem:[#allocation5 + $0x6c] sm:$0xff]
        %v235 = vld [vmem:[#allocation5 + $0x74] sm:$0xf]
        %v236 = vld [vmem:[#allocation5 + $0x78] sm:$0xff]
        %v237 = vld [vmem:[#allocation5 + $0x80] sm:$0xf]
        %v238 = vld [vmem:[#allocation5 + $0x84] sm:$0xff]
        %v239 = vld [vmem:[#allocation5 + $0x8c] sm:$0xf]
        %v240 = vld [vmem:[#allocation5 + $0x90] sm:$0xff]
        %v241 = vld [vmem:[#allocation5 + $0x98] sm:$0xf]
        %v242 = vld [vmem:[#allocation5 + $0x9c] sm:$0xff]
        %v243 = vld [vmem:[#allocation5 + $0xa4] sm:$0xf]
        %v244 = vld [vmem:[#allocation5 + $0xa8] sm:$0xff]
        %v245 = vld [vmem:[#allocation5 + $0xb0] sm:$0xf]
        %v246 = vld [vmem:[#allocation5 + $0xb4] sm:$0xff]
        %v247 = vld [vmem:[#allocation5 + $0xbc] sm:$0xf]
        %v280 = vunpack.c.l.b16 %v216
        %v281 = vunpack.c.h.b16 %v216
        %v282 = vunpack.c.l.b16 %v217
        %v283 = vunpack.c.l.b16 %v218
        %v284 = vunpack.c.h.b16 %v218
        %v285 = vunpack.c.l.b16 %v219
        %v286 = vunpack.c.l.b16 %v220
        %v287 = vunpack.c.h.b16 %v220
        %v288 = vunpack.c.l.b16 %v221
        %v289 = vunpack.c.l.b16 %v222
        %v290 = vunpack.c.h.b16 %v222
        %v291 = vunpack.c.l.b16 %v223
        %v292 = vunpack.c.l.b16 %v224
        %v293 = vunpack.c.h.b16 %v224
        %v294 = vunpack.c.l.b16 %v225
        %v295 = vunpack.c.l.b16 %v226
        %v296 = vunpack.c.h.b16 %v226
        %v297 = vunpack.c.l.b16 %v227
        %v298 = vunpack.c.l.b16 %v228
        %v299 = vunpack.c.h.b16 %v228
        %v300 = vunpack.c.l.b16 %v229
        %v301 = vunpack.c.l.b16 %v230
        %v302 = vunpack.c.h.b16 %v230
        %v303 = vunpack.c.l.b16 %v231
        %v304 = vunpack.c.l.b16 %v232
        %v305 = vunpack.c.h.b16 %v232
        %v306 = vunpack.c.l.b16 %v233
        %v307 = vunpack.c.l.b16 %v234
        %v308 = vunpack.c.h.b16 %v234
        %v309 = vunpack.c.l.b16 %v235
        %v310 = vunpack.c.l.b16 %v236
        %v311 = vunpack.c.h.b16 %v236
        %v312 = vunpack.c.l.b16 %v237
        %v313 = vunpack.c.l.b16 %v238
        %v314 = vunpack.c.h.b16 %v238
        %v315 = vunpack.c.l.b16 %v239
        %v316 = vunpack.c.l.b16 %v240
        %v317 = vunpack.c.h.b16 %v240
        %v318 = vunpack.c.l.b16 %v241
        %v319 = vunpack.c.l.b16 %v242
        %v320 = vunpack.c.h.b16 %v242
        %v321 = vunpack.c.l.b16 %v243
        %v322 = vunpack.c.l.b16 %v244
        %v323 = vunpack.c.h.b16 %v244
        %v324 = vunpack.c.l.b16 %v245
        %v325 = vunpack.c.l.b16 %v246
        %v326 = vunpack.c.h.b16 %v246
        %v327 = vunpack.c.l.b16 %v247
        %v328 = vpack.c.b16 %v283, %v280
        %v329 = vpack.c.b16 %v284, %v281
        %v330 = vpack.c.b16 %v285, %v282
        %v331 = vpack.c.b16 %v289, %v286
        %v332 = vpack.c.b16 %v290, %v287
        %v333 = vpack.c.b16 %v291, %v288
        %v334 = vpack.c.b16 %v295, %v292
        %v335 = vpack.c.b16 %v296, %v293
        %v336 = vpack.c.b16 %v297, %v294
        %v337 = vpack.c.b16 %v301, %v298
        %v338 = vpack.c.b16 %v302, %v299
        %v339 = vpack.c.b16 %v303, %v300
        %v340 = vpack.c.b16 %v307, %v304
        %v341 = vpack.c.b16 %v308, %v305
        %v342 = vpack.c.b16 %v309, %v306
        %v343 = vpack.c.b16 %v313, %v310
        %v344 = vpack.c.b16 %v314, %v311
        %v345 = vpack.c.b16 %v315, %v312
        %v346 = vpack.c.b16 %v319, %v316
        %v347 = vpack.c.b16 %v320, %v317
        %v348 = vpack.c.b16 %v321, %v318
        %v349 = vpack.c.b16 %v325, %v322
        %v350 = vpack.c.b16 %v326, %v323
        %v351 = vpack.c.b16 %v327, %v324
        %376 = vmatprep.subr.bf16.mxu0 %v350
        %377 = vmatpush1.bf16.msra.mxu0 %v349
        %378 = vmatprep.subr.bf16.mxu0 %v347
        %379 = vmatpush1.bf16.msra.mxu0 %v346
        %380 = vmatprep.subr.bf16.mxu0 %v344
        %381 = vmatpush1.bf16.msra.mxu0 %v343
        %382 = vmatprep.subr.bf16.mxu0 %v341
        %383 = vmatpush1.bf16.msra.mxu0 %v340
        %384 = vmatprep.subr.bf16.mxu0 %v338
        %385 = vmatpush1.bf16.msra.mxu0 %v337
        %386 = vmatprep.subr.bf16.mxu0 %v335
        %387 = vmatpush1.bf16.msra.mxu0 %v334
        %388 = vmatprep.subr.bf16.mxu0 %v332
        %389 = vmatpush1.bf16.msra.mxu0 %v331
        %390 = vmatprep.subr.bf16.mxu0 %v329
        %391 = vmatpush1.bf16.msra.mxu0 %v328
        %392 = vmatprep.subr.bf16.mxu0 0
        %393 = vmatpush2.bf16.msra.mxu0 0
        %394 = vmatprep.subr.bf16.mxu0 0
        %395 = vmatpush2.bf16.msra.mxu0 0
        %396 = vmatprep.subr.bf16.mxu0 0
        %397 = vmatpush2.bf16.msra.mxu0 0
        %398 = vmatprep.subr.bf16.mxu0 0
        %399 = vmatpush2.bf16.msra.mxu0 0
        %400 = vmatprep.subr.bf16.mxu0 0
        %401 = vmatpush2.bf16.msra.mxu0 0
        %402 = vmatprep.subr.bf16.mxu0 0
        %403 = vmatpush2.bf16.msra.mxu0 0
        %404 = vmatprep.subr.bf16.mxu0 0
        %405 = vmatpush2.bf16.msra.mxu0 0
        %406 = vmatprep.subr.bf16.mxu0 0
        %407 = vmatpush2.bf16.msra.mxu0 0
        %408 = vmatprep.mubr.bf16.mxu0 0
        %409 = vmatmul.mubr.bf16.gmra.mxu0 %v215
        %v410 = vpop.f32.mrf.mxu0
        %v411 = vadd.f32 0.0, %v410
        %v412 = vpop.f32.mrf.mxu0
        %v413 = vadd.f32 0.0, %v412
        %v414 = vpop.f32.mrf.mxu0
        %v415 = vpop.f32.mrf.mxu0
        %416 = vdwg.mxu0
        %417 = vmatprep.subr.bf16.mxu0 0
        %418 = vmatpush1.bf16.msra.mxu0 %v351
        %419 = vmatprep.subr.bf16.mxu0 0
        %420 = vmatpush1.bf16.msra.mxu0 %v348
        %421 = vmatprep.subr.bf16.mxu0 0
        %422 = vmatpush1.bf16.msra.mxu0 %v345
        %423 = vmatprep.subr.bf16.mxu0 0
        %424 = vmatpush1.bf16.msra.mxu0 %v342
        %425 = vmatprep.subr.bf16.mxu0 0
        %426 = vmatpush1.bf16.msra.mxu0 %v339
        %427 = vmatprep.subr.bf16.mxu0 0
        %428 = vmatpush1.bf16.msra.mxu0 %v336
        %429 = vmatprep.subr.bf16.mxu0 0
        %430 = vmatpush1.bf16.msra.mxu0 %v333
        %431 = vmatprep.subr.bf16.mxu0 0
        %432 = vmatpush1.bf16.msra.mxu0 %v330
        %433 = vmatprep.subr.bf16.mxu0 0
        %434 = vmatpush2.bf16.msra.mxu0 0
        %435 = vmatprep.subr.bf16.mxu0 0
        %436 = vmatpush2.bf16.msra.mxu0 0
        %437 = vmatprep.subr.bf16.mxu0 0
        %438 = vmatpush2.bf16.msra.mxu0 0
        %439 = vmatprep.subr.bf16.mxu0 0
        %440 = vmatpush2.bf16.msra.mxu0 0
        %441 = vmatprep.subr.bf16.mxu0 0
        %442 = vmatpush2.bf16.msra.mxu0 0
        %443 = vmatprep.subr.bf16.mxu0 0
        %444 = vmatpush2.bf16.msra.mxu0 0
        %445 = vmatprep.subr.bf16.mxu0 0
        %446 = vmatpush2.bf16.msra.mxu0 0
        %447 = vmatprep.subr.bf16.mxu0 0
        %448 = vmatpush2.bf16.msra.mxu0 0
        %449 = vmatprep.mubr.bf16.mxu0 0
        %450 = vmatmul.mubr.bf16.gmra.mxu0 %v215
        %v451 = vpop.f32.mrf.mxu0
        %v452 = vadd.f32 0.0, %v451
        %v453 = vpop.f32.mrf.mxu0
        %v454 = vpop.f32.mrf.mxu0
        %v455 = vpop.f32.mrf.mxu0
        %456 = vdwg.mxu0
        %v457 = vpack.c.bf16 %v413, %v413
        %v458 = vpack.c.bf16 %v411, %v411
        %v459 = vld [vmem:[#allocation7] sm:$0xff]
        %vm460 = vcmask 523264
        %v462 = vsel %vm460, %v457, 0
        %v465 = vsel %vm460, %v458, 0
        %467 = vmatprep.subr.bf16.mxu0 0
        %468 = vmatpush1.bf16.xpose.msra.mxu0 0
        %469 = vmatprep.subr.bf16.mxu0 0
        %470 = vmatpush1.bf16.xpose.msra.mxu0 0
        %471 = vmatprep.subr.bf16.mxu0 0
        %472 = vmatpush1.bf16.xpose.msra.mxu0 0
        %473 = vmatprep.subr.bf16.mxu0 0
        %474 = vmatpush1.bf16.xpose.msra.mxu0 0
        %475 = vmatprep.subr.bf16.mxu0 0
        %476 = vmatpush1.bf16.xpose.msra.mxu0 0
        %477 = vmatprep.subr.bf16.mxu0 0
        %478 = vmatpush1.bf16.xpose.msra.mxu0 0
        %479 = vmatprep.subr.bf16.mxu0 0
        %480 = vmatpush1.bf16.xpose.msra.mxu0 0
        %481 = vmatprep.subr.bf16.mxu0 0
        %482 = vmatpush1.bf16.xpose.msra.mxu0 %v465
        %483 = vmatprep.subr.bf16.mxu0 0
        %484 = vmatpush2.bf16.xpose.msra.mxu0 0
        %485 = vmatprep.subr.bf16.mxu0 0
        %486 = vmatpush2.bf16.xpose.msra.mxu0 0
        %487 = vmatprep.subr.bf16.mxu0 0
        %488 = vmatpush2.bf16.xpose.msra.mxu0 0
        %489 = vmatprep.subr.bf16.mxu0 0
        %490 = vmatpush2.bf16.xpose.msra.mxu0 0
        %491 = vmatprep.subr.bf16.mxu0 0
        %492 = vmatpush2.bf16.xpose.msra.mxu0 0
        %493 = vmatprep.subr.bf16.mxu0 0
        %494 = vmatpush2.bf16.xpose.msra.mxu0 0
        %495 = vmatprep.subr.bf16.mxu0 0
        %496 = vmatpush2.bf16.xpose.msra.mxu0 0
        %497 = vmatprep.subr.bf16.mxu0 0
        %498 = vmatpush2.bf16.xpose.msra.mxu0 0
        %499 = vmatprep.mubr.bf16.mxu0 0
        %500 = vmatmul.mubr.bf16.gmra.mxu0 %v462
        %v501 = vpop.f32.mrf.mxu0
        %v502 = vadd.f32 %v459, %v501
        %v503 = vpop.f32.mrf.mxu0
        %v504 = vpop.f32.mrf.mxu0
        %v505 = vpop.f32.mrf.mxu0
        %506 = vdwg.mxu0
        %vm507 = vcmask 64512
        %v508 = vsel %vm507, %v502, -inf
        %509 = vmax.xlane.f32.xlu0 %v508
        %v510 = vpop.xlane.xlu0 %509
        %v511 = vsub.f32 %v502, %v510
        %v512 = vmul.f32 %v511, 1.442695
        %v513 = vpow.pop %v512
        %v514 = vsel %vm507, %v513, 0.0
        %515 = vadd.xlane.f32.xlu0 %v514
        %v516 = vpop.xlane.xlu0 %515
        %v517 = vrcp.pop %v516
        %v518 = vmul.f32 %v513, %v517
        %v519 = vpack.c.bf16 %v518, %v518
        %v520 = vpack.c.bf16 %v452, %v452
        %v522 = vsel %vm507, %v519, 0
        %vm524 = vcmask 1043456
        %v526 = vsel %vm524, %v520, 0
        %528 = vmatprep.subr.bf16.mxu0 0
        %529 = vmatpush1.bf16.msra.mxu0 0
        %530 = vmatprep.subr.bf16.mxu0 0
        %531 = vmatpush1.bf16.msra.mxu0 0
        %532 = vmatprep.subr.bf16.mxu0 0
        %533 = vmatpush1.bf16.msra.mxu0 0
        %534 = vmatprep.subr.bf16.mxu0 0
        %535 = vmatpush1.bf16.msra.mxu0 0
        %536 = vmatprep.subr.bf16.mxu0 0
        %537 = vmatpush1.bf16.msra.mxu0 0
        %538 = vmatprep.subr.bf16.mxu0 0
        %539 = vmatpush1.bf16.msra.mxu0 0
        %540 = vmatprep.subr.bf16.mxu0 0
        %541 = vmatpush1.bf16.msra.mxu0 0
        %542 = vmatprep.subr.bf16.mxu0 0
        %543 = vmatpush1.bf16.msra.mxu0 %v526
        %544 = vmatprep.subr.bf16.mxu0 0
        %545 = vmatpush2.bf16.msra.mxu0 0
        %546 = vmatprep.subr.bf16.mxu0 0
        %547 = vmatpush2.bf16.msra.mxu0 0
        %548 = vmatprep.subr.bf16.mxu0 0
        %549 = vmatpush2.bf16.msra.mxu0 0
        %550 = vmatprep.subr.bf16.mxu0 0
        %551 = vmatpush2.bf16.msra.mxu0 0
        %552 = vmatprep.subr.bf16.mxu0 0
        %553 = vmatpush2.bf16.msra.mxu0 0
        %554 = vmatprep.subr.bf16.mxu0 0
        %555 = vmatpush2.bf16.msra.mxu0 0
        %556 = vmatprep.subr.bf16.mxu0 0
        %557 = vmatpush2.bf16.msra.mxu0 0
        %558 = vmatprep.subr.bf16.mxu0 0
        %559 = vmatpush2.bf16.msra.mxu0 0
        %560 = vmatprep.mubr.bf16.mxu0 0
        %561 = vmatmul.mubr.bf16.gmra.mxu0 %v522
        %v562 = vpop.f32.mrf.mxu0
        %v563 = vadd.f32 0.0, %v562
        %v564 = vpop.f32.mrf.mxu0
        %v565 = vpop.f32.mrf.mxu0
        %v566 = vpop.f32.mrf.mxu0
        %567 = vdwg.mxu0
        %568 = vst.msk [vmem:[%s212] sm:$0xff] %vm460, %v563
        %s569 = sand.u32 %s97, 1
        %s570 = scalar_lea.sflag [#allocation4], %s569
        %s571 = sand.u32 %s97, 1
        %s572 = smul.addr %s571, 8
        %s573 = scalar_lea.vmem [#allocation8], %s572
        // Predicated region
        $region45: #{tpu_custom_call.1} parent=31 // pred_check
          %p574 = pneg %p107
        $region46: #{tpu_custom_call.1} parent=31 // pred_check_branch
          %576 = sbr.rel (%p574) target = $region48
        $region47: #{tpu_custom_call.1} parent=31 // pred_region
          %s578 = ssub.s32 128, 128
          %579 = vsyncadd %s570, %s578
          %s580 = smul.addr %s21, 128
          %s581 = scalar_lea.hbm %s3, %s580
          %s583 = sshll.u32 %s573, 4
          %s584 = int_to_ptr.vmem [resolvable:$true] %s583
          %586 = dma.vmem_to_hbm [thread:$0]  %s584, 128, %s581, %s570
        $region48: #{tpu_custom_call.1} parent=31 // pred_fallthru
          _
      $region32: #{tpu_custom_call.1} parent=5 // pred_fallthru
        _
      %p587 = scmp.le.s32.totalorder 2, %s16
      // Predicated region
      $region49: #{tpu_custom_call.1} parent=5 // pred_check
        %p588 = pneg %p587
      $region50: #{tpu_custom_call.1} parent=5 // pred_check_branch
        %590 = sbr.rel (%p588) target = $region52
      $region51: #{tpu_custom_call.1} parent=5 // pred_region
        %s591 = ssub.s32 %s16, 2
        // Predicated region
        $region53: #{tpu_custom_call.1} parent=51 // pred_check
          %p592 = pneg %p113
        $region54: #{tpu_custom_call.1} parent=51 // pred_check_branch
          %594 = sbr.rel (%p592) target = $region56
        $region55: #{tpu_custom_call.1} parent=51 // pred_region
          %s595 = sand.u32 %s98, 1
          %s596 = scalar_lea.sflag [#allocation4], %s595
          %s597 = sand.u32 %s98, 1
          %s598 = smul.addr %s597, 8
          %s599 = scalar_lea.vmem [#allocation8], %s598
          %600 = dma.done %s596, 128
        $region56: #{tpu_custom_call.1} parent=51 // pred_fallthru
          _
      $region52: #{tpu_custom_call.1} parent=5 // pred_fallthru
        _
    $region6: #{tpu_custom_call.1} parent=1 // loop_footer
      %s20 = sadd.s32 1, %s16
    $region7: #{tpu_custom_call.1} parent=1 // loop_footer_branch
      %15 = sbr.rel target = $region3
    $region8: #{tpu_custom_call.1} parent=1 // loop_exit
      _
    %601 = vsyncpa [#allocation3], 1
    %s602 = scalar_lea.sflag [#allocation3], 1
    %603 = vsyncpa %s602, 1
    %604 = vsyncpa [#allocation6], 1
    %605 = vsyncpa [#allocation4], 1
    %s606 = scalar_lea.sflag [#allocation4], 1
    %607 = vsyncpa %s606, 1

</llo_original>
